<compile_context>
chip_gen: v7x
topology: tpu7x:2x2x1
jax: 0.10.0
libtpu: 0.0.40
codegen_flags: <defaults>
</compile_context>

<pallas_src>
import functools

import jax
import jax.numpy as jnp
from jax.experimental import pallas as pl
from jax.experimental.pallas import tpu as pltpu


def _round_up(v, m):
    return ((v + m - 1) // m) * m


def _conv_bn_relu_kernel(x_ref, w_ref, scale_ref, shift_ref, o_ref, *,
                         offsets, out_lanes, c_in, use_mxu, act):
    """One (batch, row-tile, C_out-tile) block per grid step.

    x_ref:     (1, 1, C_in, IN_LANES)   zero-padded, row-flattened image tile (lane-dense)
    w_ref:     (TCO, 9*C_in)            tap-stacked weights: w[o, t*C_in + c]
    scale_ref: (TCO, 1)                 folded BN scale = gamma / sqrt(var + eps)
    shift_ref: (TCO, 1)                 folded BN shift = beta - mean * scale
    o_ref:     (1, 1, TCO, OUT_LANES)   output tile in padded-row layout (junk lanes
                                        stripped by the wrapper)
    """
    x = x_ref[0, 0]                                        # (C_in, IN_LANES), native dtype

    if use_mxu:
        # im2col along K: one large-K contraction on the MXU, f32 accumulation.
        xcol = jnp.concatenate(
            [x[:, d:d + out_lanes] for d in offsets], axis=0)       # (9*C_in, OUT_LANES)
        acc = jnp.dot(w_ref[...], xcol, preferred_element_type=jnp.float32)
    else:
        # Tiny channel counts: VPU broadcast-FMA path (systolic array would be ~idle).
        w = w_ref[...].astype(jnp.float32)                           # (TCO, 9*C_in)
        acc = jnp.zeros((o_ref.shape[2], out_lanes), jnp.float32)
        for t, d in enumerate(offsets):                              # 9 static taps, unrolled
            xs = x[:, d:d + out_lanes].astype(jnp.float32)           # (C_in, OUT_LANES)
            for c in range(c_in):
                k = t * c_in + c
                acc = acc + w[:, k:k + 1] * xs[c:c + 1, :]

    y = acc * scale_ref[...] + shift_ref[...]              # folded BatchNorm (f32 epilogue)
    if act:
        y = jnp.maximum(y, 0.0)                            # ReLU
    o_ref[0, 0] = y.astype(o_ref.dtype)


def conv2d_block(x, weight, gamma, beta, running_mean, running_var, *,
                 eps=1e-5, act=True):
    """Forward pass of the PyTorch Conv2D block (3x3, pad=1, no bias) + BN + ReLU.

    x:      (B, C_in, H, W)  NCHW, like the PyTorch module.
    weight: (C_out, C_in, 3, 3)
    gamma/beta/running_mean/running_var: (C_out,) BatchNorm2d parameters/stats.
    """
    B, C_in, H, W = x.shape
    C_out = weight.shape[0]
    assert weight.shape == (C_out, C_in, 3, 3)
    Wp = W + 2                                             # padded row width

    # ---- C_out tile: full dim if small, else a multiple-of-8 divisor <= 256 ----
    if C_out <= 256:
        tco = C_out
    else:
        cands = [d for d in range(8, 257, 8) if C_out % d == 0]
        tco = max(cands) if cands else C_out
    n_co = C_out // tco

    # ---- row tile: divisor of H, bounded lanes, enough grid steps for pipelining ----
    divs = [d for d in range(1, H + 1) if H % d == 0]
    cands = [d for d in divs if d * Wp <= 4096] or [divs[0]]
    th = max(cands)
    while B * (H // th) * n_co < 4 and th % 2 == 0:        # enough steps for 2 TCs + pipeline
        th //= 2
    n_rt = H // th

    out_lanes = _round_up(th * Wp, 128)                    # unmasked 128-multiple stores
    in_lanes = _round_up(max((th + 2) * Wp, 2 * Wp + 2 + out_lanes), 128)

    # ---- wrapper-side layout plumbing: lane-dense row tiles with a 2-row halo ----
    xp = jnp.pad(x, ((0, 0), (0, 0), (1, 1), (1, 1)))      # (B, C_in, H+2, Wp)
    xt = jnp.stack([xp[:, :, rt * th: rt * th + th + 2, :] for rt in range(n_rt)],
                   axis=1)                                 # (B, n_rt, C_in, th+2, Wp)
    xt = xt.reshape(B, n_rt, C_in, (th + 2) * Wp)
    xt = jnp.pad(xt, ((0, 0), (0, 0), (0, 0), (0, in_lanes - (th + 2) * Wp)))

    # tap t = kh*3 + kw -> lane offset kh*Wp + kw; weights stacked along K to match.
    w2 = jnp.transpose(weight, (0, 2, 3, 1)).reshape(C_out, 9 * C_in).astype(x.dtype)
    offsets = tuple(kh * Wp + kw for kh in range(3) for kw in range(3))

    # fold BatchNorm (inference) into per-channel scale/shift (kept f32)
    inv_std = 1.0 / jnp.sqrt(running_var.astype(jnp.float32) + eps)
    scale = (gamma.astype(jnp.float32) * inv_std).reshape(C_out, 1)
    shift = (beta.astype(jnp.float32)
             - running_mean.astype(jnp.float32) * scale[:, 0]).reshape(C_out, 1)

    use_mxu = (C_in > 16) or (C_out > 16)

    kernel = functools.partial(_conv_bn_relu_kernel, offsets=offsets,
                               out_lanes=out_lanes, c_in=C_in,
                               use_mxu=use_mxu, act=act)

    itemsize = int(x.dtype.itemsize)
    # Rough per-step footprint (x/out double-buffered + params) -> cross-gen VMEM limit;
    # capped well under v7x's 64 MiB physical VMEM.
    per_step = (C_in * in_lanes + tco * out_lanes) * itemsize \
               + tco * 9 * C_in * itemsize + 2 * tco * 4
    vmem_limit = int(min(max(32 * 1024 * 1024, 8 * per_step), 48 * 1024 * 1024))

    out_flat = pl.pallas_call(
        kernel,
        out_shape=jax.ShapeDtypeStruct((B, n_rt, C_out, out_lanes), x.dtype),
        grid_spec=pltpu.PrefetchScalarGridSpec(
            num_scalar_prefetch=0,
            grid=(B, n_rt, n_co),                          # pipelined over batch/rows/Cout
            in_specs=[
                # x tile: index constant over the inner C_out-tile axis -> stays resident
                pl.BlockSpec((1, 1, C_in, in_lanes), lambda b, rt, co: (b, rt, 0, 0)),
                # small parameters (re-used across b/rt; only change with the cout tile)
                pl.BlockSpec((tco, 9 * C_in), lambda b, rt, co: (co, 0)),
                pl.BlockSpec((tco, 1), lambda b, rt, co: (co, 0)),
                pl.BlockSpec((tco, 1), lambda b, rt, co: (co, 0)),
            ],
            out_specs=pl.BlockSpec((1, 1, tco, out_lanes),
                                   lambda b, rt, co: (b, rt, co, 0)),
        ),
        compiler_params=pltpu.CompilerParams(
            dimension_semantics=("parallel", "parallel", "parallel"),
            vmem_limit_bytes=vmem_limit,
        ),
        cost_estimate=pl.CostEstimate(
            flops=2 * B * C_out * C_in * 9 * H * W,
            transcendentals=0,
            bytes_accessed=itemsize * (B * n_rt * C_in * in_lanes
                                       + B * n_rt * C_out * out_lanes
                                       + C_out * 9 * C_in) + 2 * C_out * 4,
        ),
    )(xt, w2, scale, shift)

    # strip lane padding / junk boundary columns, restore NCHW
    out = out_flat[..., :th * Wp].reshape(B, n_rt, C_out, th, Wp)
    out = out.transpose(0, 2, 1, 3, 4).reshape(B, C_out, H, Wp)
    return out[:, :, :, :W]


def reference(x, weight, gamma, beta, running_mean, running_var, *, eps=1e-5, act=True):
    y = jax.lax.conv_general_dilated(
        x.astype(jnp.float32), weight.astype(jnp.float32),
        window_strides=(1, 1), padding=((1, 1), (1, 1)),
        dimension_numbers=("NCHW", "OIHW", "NCHW"))
    scale = gamma / jnp.sqrt(running_var + eps)
    shift = beta - running_mean * scale
    y = y * scale[None, :, None, None] + shift[None, :, None, None]
    if act:
        y = jnp.maximum(y, 0.0)
    return y.astype(x.dtype)


if __name__ == "__main__":
    B, C_in, C_out, H, W = 2, 4, 8, 16, 16

    key = jax.random.PRNGKey(0)
    kx, kw, kg, kb, km, kv = jax.random.split(key, 6)

    x = jax.random.normal(kx, (B, C_in, H, W), dtype=jnp.float32)
    weight = jax.random.normal(kw, (C_out, C_in, 3, 3), dtype=jnp.float32) * 0.1
    gamma = 1.0 + 0.1 * jax.random.normal(kg, (C_out,), dtype=jnp.float32)
    beta = 0.1 * jax.random.normal(kb, (C_out,), dtype=jnp.float32)
    running_mean = 0.1 * jax.random.normal(km, (C_out,), dtype=jnp.float32)
    running_var = jax.random.uniform(kv, (C_out,), dtype=jnp.float32,
                                     minval=0.5, maxval=1.5)

    out = conv2d_block(x, weight, gamma, beta, running_mean, running_var, act=True)
    jax.block_until_ready(out)

    ref = reference(x, weight, gamma, beta, running_mean, running_var, act=True)
    assert out.shape == ref.shape and out.dtype == ref.dtype
    err = float(jnp.max(jnp.abs(out - ref)))
    assert jnp.allclose(out, ref, atol=1e-4, rtol=1e-4), err

    print("KERNEL_OK")
</pallas_src>

<mosaic_0001>
module attributes {stable_mosaic.version = 11 : i64} {
  func.func @_conv_bn_relu_kernel(%arg0: i32, %arg1: i32, %arg2: i32, %arg3: memref<1x1x4x384xf32, #tpu.memory_space<vmem>>, %arg4: memref<8x36xf32, #tpu.memory_space<vmem>>, %arg5: memref<8x1xf32, #tpu.memory_space<vmem>>, %arg6: memref<8x1xf32, #tpu.memory_space<vmem>>, %arg7: memref<1x1x8x256xf32, #tpu.memory_space<vmem>>) attributes {dimension_semantics = [#tpu.dimension_semantics<parallel>, #tpu.dimension_semantics<parallel>, #tpu.dimension_semantics<parallel>], iteration_bounds = array<i64: 2, 2, 1>, scalar_prefetch = 0 : i64, scratch_operands = 0 : i64, tpu.core_type = #tpu.core_type<tc>, window_params = [{transform_indices = @transform_0, window_bounds = array<i64: 1, 1, 4, 384>}, {transform_indices = @transform_1, window_bounds = array<i64: 8, 36>}, {transform_indices = @transform_2, window_bounds = array<i64: 8, 1>}, {transform_indices = @transform_3, window_bounds = array<i64: 8, 1>}, {transform_indices = @transform_4, window_bounds = array<i64: 1, 1, 8, 256>}]} {
    %c0 = arith.constant 0 : index
    %c0_0 = arith.constant 0 : index
    %c0_1 = arith.constant 0 : index
    %c0_2 = arith.constant 0 : index
    %0 = vector.load %arg3[%c0, %c0_0, %c0_1, %c0_2] : memref<1x1x4x384xf32, #tpu.memory_space<vmem>>, vector<1x1x4x384xf32>
    %1 = vector.shape_cast %0 : vector<1x1x4x384xf32> to vector<4x384xf32>
    %c0_3 = arith.constant 0 : index
    %c0_4 = arith.constant 0 : index
    %2 = vector.load %arg4[%c0_3, %c0_4] : memref<8x36xf32, #tpu.memory_space<vmem>>, vector<8x36xf32>
    %cst = arith.constant 0.000000e+00 : f32
    %3 = vector.broadcast %cst : f32 to vector<8x256xf32>
    %4 = vector.extract_strided_slice %1 {offsets = [0, 0], sizes = [4, 256], strides = [1, 1]} : vector<4x384xf32> to vector<4x256xf32>
    %5 = vector.extract_strided_slice %2 {offsets = [0, 0], sizes = [8, 1], strides = [1, 1]} : vector<8x36xf32> to vector<8x1xf32>
    %6 = vector.extract_strided_slice %4 {offsets = [0, 0], sizes = [1, 256], strides = [1, 1]} : vector<4x256xf32> to vector<1x256xf32>
    %7 = vector.broadcast %5 : vector<8x1xf32> to vector<8x256xf32>
    %8 = vector.broadcast %6 : vector<1x256xf32> to vector<8x256xf32>
    %9 = arith.mulf %7, %8 : vector<8x256xf32>
    %10 = arith.addf %3, %9 : vector<8x256xf32>
    %11 = vector.extract_strided_slice %2 {offsets = [0, 1], sizes = [8, 1], strides = [1, 1]} : vector<8x36xf32> to vector<8x1xf32>
    %12 = vector.extract_strided_slice %4 {offsets = [1, 0], sizes = [1, 256], strides = [1, 1]} : vector<4x256xf32> to vector<1x256xf32>
    %13 = vector.broadcast %11 : vector<8x1xf32> to vector<8x256xf32>
    %14 = vector.broadcast %12 : vector<1x256xf32> to vector<8x256xf32>
    %15 = arith.mulf %13, %14 : vector<8x256xf32>
    %16 = arith.addf %10, %15 : vector<8x256xf32>
    %17 = vector.extract_strided_slice %2 {offsets = [0, 2], sizes = [8, 1], strides = [1, 1]} : vector<8x36xf32> to vector<8x1xf32>
    %18 = vector.extract_strided_slice %4 {offsets = [2, 0], sizes = [1, 256], strides = [1, 1]} : vector<4x256xf32> to vector<1x256xf32>
    %19 = vector.broadcast %17 : vector<8x1xf32> to vector<8x256xf32>
    %20 = vector.broadcast %18 : vector<1x256xf32> to vector<8x256xf32>
    %21 = arith.mulf %19, %20 : vector<8x256xf32>
    %22 = arith.addf %16, %21 : vector<8x256xf32>
    %23 = vector.extract_strided_slice %2 {offsets = [0, 3], sizes = [8, 1], strides = [1, 1]} : vector<8x36xf32> to vector<8x1xf32>
    %24 = vector.extract_strided_slice %4 {offsets = [3, 0], sizes = [1, 256], strides = [1, 1]} : vector<4x256xf32> to vector<1x256xf32>
    %25 = vector.broadcast %23 : vector<8x1xf32> to vector<8x256xf32>
    %26 = vector.broadcast %24 : vector<1x256xf32> to vector<8x256xf32>
    %27 = arith.mulf %25, %26 : vector<8x256xf32>
    %28 = arith.addf %22, %27 : vector<8x256xf32>
    %29 = vector.extract_strided_slice %1 {offsets = [0, 1], sizes = [4, 256], strides = [1, 1]} : vector<4x384xf32> to vector<4x256xf32>
    %30 = vector.extract_strided_slice %2 {offsets = [0, 4], sizes = [8, 1], strides = [1, 1]} : vector<8x36xf32> to vector<8x1xf32>
    %31 = vector.extract_strided_slice %29 {offsets = [0, 0], sizes = [1, 256], strides = [1, 1]} : vector<4x256xf32> to vector<1x256xf32>
    %32 = vector.broadcast %30 : vector<8x1xf32> to vector<8x256xf32>
    %33 = vector.broadcast %31 : vector<1x256xf32> to vector<8x256xf32>
    %34 = arith.mulf %32, %33 : vector<8x256xf32>
    %35 = arith.addf %28, %34 : vector<8x256xf32>
    %36 = vector.extract_strided_slice %2 {offsets = [0, 5], sizes = [8, 1], strides = [1, 1]} : vector<8x36xf32> to vector<8x1xf32>
    %37 = vector.extract_strided_slice %29 {offsets = [1, 0], sizes = [1, 256], strides = [1, 1]} : vector<4x256xf32> to vector<1x256xf32>
    %38 = vector.broadcast %36 : vector<8x1xf32> to vector<8x256xf32>
    %39 = vector.broadcast %37 : vector<1x256xf32> to vector<8x256xf32>
    %40 = arith.mulf %38, %39 : vector<8x256xf32>
    %41 = arith.addf %35, %40 : vector<8x256xf32>
    %42 = vector.extract_strided_slice %2 {offsets = [0, 6], sizes = [8, 1], strides = [1, 1]} : vector<8x36xf32> to vector<8x1xf32>
    %43 = vector.extract_strided_slice %29 {offsets = [2, 0], sizes = [1, 256], strides = [1, 1]} : vector<4x256xf32> to vector<1x256xf32>
    %44 = vector.broadcast %42 : vector<8x1xf32> to vector<8x256xf32>
    %45 = vector.broadcast %43 : vector<1x256xf32> to vector<8x256xf32>
    %46 = arith.mulf %44, %45 : vector<8x256xf32>
    %47 = arith.addf %41, %46 : vector<8x256xf32>
    %48 = vector.extract_strided_slice %2 {offsets = [0, 7], sizes = [8, 1], strides = [1, 1]} : vector<8x36xf32> to vector<8x1xf32>
    %49 = vector.extract_strided_slice %29 {offsets = [3, 0], sizes = [1, 256], strides = [1, 1]} : vector<4x256xf32> to vector<1x256xf32>
    %50 = vector.broadcast %48 : vector<8x1xf32> to vector<8x256xf32>
    %51 = vector.broadcast %49 : vector<1x256xf32> to vector<8x256xf32>
    %52 = arith.mulf %50, %51 : vector<8x256xf32>
    %53 = arith.addf %47, %52 : vector<8x256xf32>
    %54 = vector.extract_strided_slice %1 {offsets = [0, 2], sizes = [4, 256], strides = [1, 1]} : vector<4x384xf32> to vector<4x256xf32>
    %55 = vector.extract_strided_slice %2 {offsets = [0, 8], sizes = [8, 1], strides = [1, 1]} : vector<8x36xf32> to vector<8x1xf32>
    %56 = vector.extract_strided_slice %54 {offsets = [0, 0], sizes = [1, 256], strides = [1, 1]} : vector<4x256xf32> to vector<1x256xf32>
    %57 = vector.broadcast %55 : vector<8x1xf32> to vector<8x256xf32>
    %58 = vector.broadcast %56 : vector<1x256xf32> to vector<8x256xf32>
    %59 = arith.mulf %57, %58 : vector<8x256xf32>
    %60 = arith.addf %53, %59 : vector<8x256xf32>
    %61 = vector.extract_strided_slice %2 {offsets = [0, 9], sizes = [8, 1], strides = [1, 1]} : vector<8x36xf32> to vector<8x1xf32>
    %62 = vector.extract_strided_slice %54 {offsets = [1, 0], sizes = [1, 256], strides = [1, 1]} : vector<4x256xf32> to vector<1x256xf32>
    %63 = vector.broadcast %61 : vector<8x1xf32> to vector<8x256xf32>
    %64 = vector.broadcast %62 : vector<1x256xf32> to vector<8x256xf32>
    %65 = arith.mulf %63, %64 : vector<8x256xf32>
    %66 = arith.addf %60, %65 : vector<8x256xf32>
    %67 = vector.extract_strided_slice %2 {offsets = [0, 10], sizes = [8, 1], strides = [1, 1]} : vector<8x36xf32> to vector<8x1xf32>
    %68 = vector.extract_strided_slice %54 {offsets = [2, 0], sizes = [1, 256], strides = [1, 1]} : vector<4x256xf32> to vector<1x256xf32>
    %69 = vector.broadcast %67 : vector<8x1xf32> to vector<8x256xf32>
    %70 = vector.broadcast %68 : vector<1x256xf32> to vector<8x256xf32>
    %71 = arith.mulf %69, %70 : vector<8x256xf32>
    %72 = arith.addf %66, %71 : vector<8x256xf32>
    %73 = vector.extract_strided_slice %2 {offsets = [0, 11], sizes = [8, 1], strides = [1, 1]} : vector<8x36xf32> to vector<8x1xf32>
    %74 = vector.extract_strided_slice %54 {offsets = [3, 0], sizes = [1, 256], strides = [1, 1]} : vector<4x256xf32> to vector<1x256xf32>
    %75 = vector.broadcast %73 : vector<8x1xf32> to vector<8x256xf32>
    %76 = vector.broadcast %74 : vector<1x256xf32> to vector<8x256xf32>
    %77 = arith.mulf %75, %76 : vector<8x256xf32>
    %78 = arith.addf %72, %77 : vector<8x256xf32>
    %79 = vector.extract_strided_slice %1 {offsets = [0, 18], sizes = [4, 256], strides = [1, 1]} : vector<4x384xf32> to vector<4x256xf32>
    %80 = vector.extract_strided_slice %2 {offsets = [0, 12], sizes = [8, 1], strides = [1, 1]} : vector<8x36xf32> to vector<8x1xf32>
    %81 = vector.extract_strided_slice %79 {offsets = [0, 0], sizes = [1, 256], strides = [1, 1]} : vector<4x256xf32> to vector<1x256xf32>
    %82 = vector.broadcast %80 : vector<8x1xf32> to vector<8x256xf32>
    %83 = vector.broadcast %81 : vector<1x256xf32> to vector<8x256xf32>
    %84 = arith.mulf %82, %83 : vector<8x256xf32>
    %85 = arith.addf %78, %84 : vector<8x256xf32>
    %86 = vector.extract_strided_slice %2 {offsets = [0, 13], sizes = [8, 1], strides = [1, 1]} : vector<8x36xf32> to vector<8x1xf32>
    %87 = vector.extract_strided_slice %79 {offsets = [1, 0], sizes = [1, 256], strides = [1, 1]} : vector<4x256xf32> to vector<1x256xf32>
    %88 = vector.broadcast %86 : vector<8x1xf32> to vector<8x256xf32>
    %89 = vector.broadcast %87 : vector<1x256xf32> to vector<8x256xf32>
    %90 = arith.mulf %88, %89 : vector<8x256xf32>
    %91 = arith.addf %85, %90 : vector<8x256xf32>
    %92 = vector.extract_strided_slice %2 {offsets = [0, 14], sizes = [8, 1], strides = [1, 1]} : vector<8x36xf32> to vector<8x1xf32>
    %93 = vector.extract_strided_slice %79 {offsets = [2, 0], sizes = [1, 256], strides = [1, 1]} : vector<4x256xf32> to vector<1x256xf32>
    %94 = vector.broadcast %92 : vector<8x1xf32> to vector<8x256xf32>
    %95 = vector.broadcast %93 : vector<1x256xf32> to vector<8x256xf32>
    %96 = arith.mulf %94, %95 : vector<8x256xf32>
    %97 = arith.addf %91, %96 : vector<8x256xf32>
    %98 = vector.extract_strided_slice %2 {offsets = [0, 15], sizes = [8, 1], strides = [1, 1]} : vector<8x36xf32> to vector<8x1xf32>
    %99 = vector.extract_strided_slice %79 {offsets = [3, 0], sizes = [1, 256], strides = [1, 1]} : vector<4x256xf32> to vector<1x256xf32>
    %100 = vector.broadcast %98 : vector<8x1xf32> to vector<8x256xf32>
    %101 = vector.broadcast %99 : vector<1x256xf32> to vector<8x256xf32>
    %102 = arith.mulf %100, %101 : vector<8x256xf32>
    %103 = arith.addf %97, %102 : vector<8x256xf32>
    %104 = vector.extract_strided_slice %1 {offsets = [0, 19], sizes = [4, 256], strides = [1, 1]} : vector<4x384xf32> to vector<4x256xf32>
    %105 = vector.extract_strided_slice %2 {offsets = [0, 16], sizes = [8, 1], strides = [1, 1]} : vector<8x36xf32> to vector<8x1xf32>
    %106 = vector.extract_strided_slice %104 {offsets = [0, 0], sizes = [1, 256], strides = [1, 1]} : vector<4x256xf32> to vector<1x256xf32>
    %107 = vector.broadcast %105 : vector<8x1xf32> to vector<8x256xf32>
    %108 = vector.broadcast %106 : vector<1x256xf32> to vector<8x256xf32>
    %109 = arith.mulf %107, %108 : vector<8x256xf32>
    %110 = arith.addf %103, %109 : vector<8x256xf32>
    %111 = vector.extract_strided_slice %2 {offsets = [0, 17], sizes = [8, 1], strides = [1, 1]} : vector<8x36xf32> to vector<8x1xf32>
    %112 = vector.extract_strided_slice %104 {offsets = [1, 0], sizes = [1, 256], strides = [1, 1]} : vector<4x256xf32> to vector<1x256xf32>
    %113 = vector.broadcast %111 : vector<8x1xf32> to vector<8x256xf32>
    %114 = vector.broadcast %112 : vector<1x256xf32> to vector<8x256xf32>
    %115 = arith.mulf %113, %114 : vector<8x256xf32>
    %116 = arith.addf %110, %115 : vector<8x256xf32>
    %117 = vector.extract_strided_slice %2 {offsets = [0, 18], sizes = [8, 1], strides = [1, 1]} : vector<8x36xf32> to vector<8x1xf32>
    %118 = vector.extract_strided_slice %104 {offsets = [2, 0], sizes = [1, 256], strides = [1, 1]} : vector<4x256xf32> to vector<1x256xf32>
    %119 = vector.broadcast %117 : vector<8x1xf32> to vector<8x256xf32>
    %120 = vector.broadcast %118 : vector<1x256xf32> to vector<8x256xf32>
    %121 = arith.mulf %119, %120 : vector<8x256xf32>
    %122 = arith.addf %116, %121 : vector<8x256xf32>
    %123 = vector.extract_strided_slice %2 {offsets = [0, 19], sizes = [8, 1], strides = [1, 1]} : vector<8x36xf32> to vector<8x1xf32>
    %124 = vector.extract_strided_slice %104 {offsets = [3, 0], sizes = [1, 256], strides = [1, 1]} : vector<4x256xf32> to vector<1x256xf32>
    %125 = vector.broadcast %123 : vector<8x1xf32> to vector<8x256xf32>
    %126 = vector.broadcast %124 : vector<1x256xf32> to vector<8x256xf32>
    %127 = arith.mulf %125, %126 : vector<8x256xf32>
    %128 = arith.addf %122, %127 : vector<8x256xf32>
    %129 = vector.extract_strided_slice %1 {offsets = [0, 20], sizes = [4, 256], strides = [1, 1]} : vector<4x384xf32> to vector<4x256xf32>
    %130 = vector.extract_strided_slice %2 {offsets = [0, 20], sizes = [8, 1], strides = [1, 1]} : vector<8x36xf32> to vector<8x1xf32>
    %131 = vector.extract_strided_slice %129 {offsets = [0, 0], sizes = [1, 256], strides = [1, 1]} : vector<4x256xf32> to vector<1x256xf32>
    %132 = vector.broadcast %130 : vector<8x1xf32> to vector<8x256xf32>
    %133 = vector.broadcast %131 : vector<1x256xf32> to vector<8x256xf32>
    %134 = arith.mulf %132, %133 : vector<8x256xf32>
    %135 = arith.addf %128, %134 : vector<8x256xf32>
    %136 = vector.extract_strided_slice %2 {offsets = [0, 21], sizes = [8, 1], strides = [1, 1]} : vector<8x36xf32> to vector<8x1xf32>
    %137 = vector.extract_strided_slice %129 {offsets = [1, 0], sizes = [1, 256], strides = [1, 1]} : vector<4x256xf32> to vector<1x256xf32>
    %138 = vector.broadcast %136 : vector<8x1xf32> to vector<8x256xf32>
    %139 = vector.broadcast %137 : vector<1x256xf32> to vector<8x256xf32>
    %140 = arith.mulf %138, %139 : vector<8x256xf32>
    %141 = arith.addf %135, %140 : vector<8x256xf32>
    %142 = vector.extract_strided_slice %2 {offsets = [0, 22], sizes = [8, 1], strides = [1, 1]} : vector<8x36xf32> to vector<8x1xf32>
    %143 = vector.extract_strided_slice %129 {offsets = [2, 0], sizes = [1, 256], strides = [1, 1]} : vector<4x256xf32> to vector<1x256xf32>
    %144 = vector.broadcast %142 : vector<8x1xf32> to vector<8x256xf32>
    %145 = vector.broadcast %143 : vector<1x256xf32> to vector<8x256xf32>
    %146 = arith.mulf %144, %145 : vector<8x256xf32>
    %147 = arith.addf %141, %146 : vector<8x256xf32>
    %148 = vector.extract_strided_slice %2 {offsets = [0, 23], sizes = [8, 1], strides = [1, 1]} : vector<8x36xf32> to vector<8x1xf32>
    %149 = vector.extract_strided_slice %129 {offsets = [3, 0], sizes = [1, 256], strides = [1, 1]} : vector<4x256xf32> to vector<1x256xf32>
    %150 = vector.broadcast %148 : vector<8x1xf32> to vector<8x256xf32>
    %151 = vector.broadcast %149 : vector<1x256xf32> to vector<8x256xf32>
    %152 = arith.mulf %150, %151 : vector<8x256xf32>
    %153 = arith.addf %147, %152 : vector<8x256xf32>
    %154 = vector.extract_strided_slice %1 {offsets = [0, 36], sizes = [4, 256], strides = [1, 1]} : vector<4x384xf32> to vector<4x256xf32>
    %155 = vector.extract_strided_slice %2 {offsets = [0, 24], sizes = [8, 1], strides = [1, 1]} : vector<8x36xf32> to vector<8x1xf32>
    %156 = vector.extract_strided_slice %154 {offsets = [0, 0], sizes = [1, 256], strides = [1, 1]} : vector<4x256xf32> to vector<1x256xf32>
    %157 = vector.broadcast %155 : vector<8x1xf32> to vector<8x256xf32>
    %158 = vector.broadcast %156 : vector<1x256xf32> to vector<8x256xf32>
    %159 = arith.mulf %157, %158 : vector<8x256xf32>
    %160 = arith.addf %153, %159 : vector<8x256xf32>
    %161 = vector.extract_strided_slice %2 {offsets = [0, 25], sizes = [8, 1], strides = [1, 1]} : vector<8x36xf32> to vector<8x1xf32>
    %162 = vector.extract_strided_slice %154 {offsets = [1, 0], sizes = [1, 256], strides = [1, 1]} : vector<4x256xf32> to vector<1x256xf32>
    %163 = vector.broadcast %161 : vector<8x1xf32> to vector<8x256xf32>
    %164 = vector.broadcast %162 : vector<1x256xf32> to vector<8x256xf32>
    %165 = arith.mulf %163, %164 : vector<8x256xf32>
    %166 = arith.addf %160, %165 : vector<8x256xf32>
    %167 = vector.extract_strided_slice %2 {offsets = [0, 26], sizes = [8, 1], strides = [1, 1]} : vector<8x36xf32> to vector<8x1xf32>
    %168 = vector.extract_strided_slice %154 {offsets = [2, 0], sizes = [1, 256], strides = [1, 1]} : vector<4x256xf32> to vector<1x256xf32>
    %169 = vector.broadcast %167 : vector<8x1xf32> to vector<8x256xf32>
    %170 = vector.broadcast %168 : vector<1x256xf32> to vector<8x256xf32>
    %171 = arith.mulf %169, %170 : vector<8x256xf32>
    %172 = arith.addf %166, %171 : vector<8x256xf32>
    %173 = vector.extract_strided_slice %2 {offsets = [0, 27], sizes = [8, 1], strides = [1, 1]} : vector<8x36xf32> to vector<8x1xf32>
    %174 = vector.extract_strided_slice %154 {offsets = [3, 0], sizes = [1, 256], strides = [1, 1]} : vector<4x256xf32> to vector<1x256xf32>
    %175 = vector.broadcast %173 : vector<8x1xf32> to vector<8x256xf32>
    %176 = vector.broadcast %174 : vector<1x256xf32> to vector<8x256xf32>
    %177 = arith.mulf %175, %176 : vector<8x256xf32>
    %178 = arith.addf %172, %177 : vector<8x256xf32>
    %179 = vector.extract_strided_slice %1 {offsets = [0, 37], sizes = [4, 256], strides = [1, 1]} : vector<4x384xf32> to vector<4x256xf32>
    %180 = vector.extract_strided_slice %2 {offsets = [0, 28], sizes = [8, 1], strides = [1, 1]} : vector<8x36xf32> to vector<8x1xf32>
    %181 = vector.extract_strided_slice %179 {offsets = [0, 0], sizes = [1, 256], strides = [1, 1]} : vector<4x256xf32> to vector<1x256xf32>
    %182 = vector.broadcast %180 : vector<8x1xf32> to vector<8x256xf32>
    %183 = vector.broadcast %181 : vector<1x256xf32> to vector<8x256xf32>
    %184 = arith.mulf %182, %183 : vector<8x256xf32>
    %185 = arith.addf %178, %184 : vector<8x256xf32>
    %186 = vector.extract_strided_slice %2 {offsets = [0, 29], sizes = [8, 1], strides = [1, 1]} : vector<8x36xf32> to vector<8x1xf32>
    %187 = vector.extract_strided_slice %179 {offsets = [1, 0], sizes = [1, 256], strides = [1, 1]} : vector<4x256xf32> to vector<1x256xf32>
    %188 = vector.broadcast %186 : vector<8x1xf32> to vector<8x256xf32>
    %189 = vector.broadcast %187 : vector<1x256xf32> to vector<8x256xf32>
    %190 = arith.mulf %188, %189 : vector<8x256xf32>
    %191 = arith.addf %185, %190 : vector<8x256xf32>
    %192 = vector.extract_strided_slice %2 {offsets = [0, 30], sizes = [8, 1], strides = [1, 1]} : vector<8x36xf32> to vector<8x1xf32>
    %193 = vector.extract_strided_slice %179 {offsets = [2, 0], sizes = [1, 256], strides = [1, 1]} : vector<4x256xf32> to vector<1x256xf32>
    %194 = vector.broadcast %192 : vector<8x1xf32> to vector<8x256xf32>
    %195 = vector.broadcast %193 : vector<1x256xf32> to vector<8x256xf32>
    %196 = arith.mulf %194, %195 : vector<8x256xf32>
    %197 = arith.addf %191, %196 : vector<8x256xf32>
    %198 = vector.extract_strided_slice %2 {offsets = [0, 31], sizes = [8, 1], strides = [1, 1]} : vector<8x36xf32> to vector<8x1xf32>
    %199 = vector.extract_strided_slice %179 {offsets = [3, 0], sizes = [1, 256], strides = [1, 1]} : vector<4x256xf32> to vector<1x256xf32>
    %200 = vector.broadcast %198 : vector<8x1xf32> to vector<8x256xf32>
    %201 = vector.broadcast %199 : vector<1x256xf32> to vector<8x256xf32>
    %202 = arith.mulf %200, %201 : vector<8x256xf32>
    %203 = arith.addf %197, %202 : vector<8x256xf32>
    %204 = vector.extract_strided_slice %1 {offsets = [0, 38], sizes = [4, 256], strides = [1, 1]} : vector<4x384xf32> to vector<4x256xf32>
    %205 = vector.extract_strided_slice %2 {offsets = [0, 32], sizes = [8, 1], strides = [1, 1]} : vector<8x36xf32> to vector<8x1xf32>
    %206 = vector.extract_strided_slice %204 {offsets = [0, 0], sizes = [1, 256], strides = [1, 1]} : vector<4x256xf32> to vector<1x256xf32>
    %207 = vector.broadcast %205 : vector<8x1xf32> to vector<8x256xf32>
    %208 = vector.broadcast %206 : vector<1x256xf32> to vector<8x256xf32>
    %209 = arith.mulf %207, %208 : vector<8x256xf32>
    %210 = arith.addf %203, %209 : vector<8x256xf32>
    %211 = vector.extract_strided_slice %2 {offsets = [0, 33], sizes = [8, 1], strides = [1, 1]} : vector<8x36xf32> to vector<8x1xf32>
    %212 = vector.extract_strided_slice %204 {offsets = [1, 0], sizes = [1, 256], strides = [1, 1]} : vector<4x256xf32> to vector<1x256xf32>
    %213 = vector.broadcast %211 : vector<8x1xf32> to vector<8x256xf32>
    %214 = vector.broadcast %212 : vector<1x256xf32> to vector<8x256xf32>
    %215 = arith.mulf %213, %214 : vector<8x256xf32>
    %216 = arith.addf %210, %215 : vector<8x256xf32>
    %217 = vector.extract_strided_slice %2 {offsets = [0, 34], sizes = [8, 1], strides = [1, 1]} : vector<8x36xf32> to vector<8x1xf32>
    %218 = vector.extract_strided_slice %204 {offsets = [2, 0], sizes = [1, 256], strides = [1, 1]} : vector<4x256xf32> to vector<1x256xf32>
    %219 = vector.broadcast %217 : vector<8x1xf32> to vector<8x256xf32>
    %220 = vector.broadcast %218 : vector<1x256xf32> to vector<8x256xf32>
    %221 = arith.mulf %219, %220 : vector<8x256xf32>
    %222 = arith.addf %216, %221 : vector<8x256xf32>
    %223 = vector.extract_strided_slice %2 {offsets = [0, 35], sizes = [8, 1], strides = [1, 1]} : vector<8x36xf32> to vector<8x1xf32>
    %224 = vector.extract_strided_slice %204 {offsets = [3, 0], sizes = [1, 256], strides = [1, 1]} : vector<4x256xf32> to vector<1x256xf32>
    %225 = vector.broadcast %223 : vector<8x1xf32> to vector<8x256xf32>
    %226 = vector.broadcast %224 : vector<1x256xf32> to vector<8x256xf32>
    %227 = arith.mulf %225, %226 : vector<8x256xf32>
    %228 = arith.addf %222, %227 : vector<8x256xf32>
    %c0_5 = arith.constant 0 : index
    %c0_6 = arith.constant 0 : index
    %229 = vector.load %arg5[%c0_5, %c0_6] : memref<8x1xf32, #tpu.memory_space<vmem>>, vector<8x1xf32>
    %230 = vector.broadcast %229 : vector<8x1xf32> to vector<8x256xf32>
    %231 = arith.mulf %228, %230 : vector<8x256xf32>
    %c0_7 = arith.constant 0 : index
    %c0_8 = arith.constant 0 : index
    %232 = vector.load %arg6[%c0_7, %c0_8] : memref<8x1xf32, #tpu.memory_space<vmem>>, vector<8x1xf32>
    %233 = vector.broadcast %232 : vector<8x1xf32> to vector<8x256xf32>
    %234 = arith.addf %231, %233 : vector<8x256xf32>
    %cst_9 = arith.constant 0.000000e+00 : f32
    %235 = vector.broadcast %cst_9 : f32 to vector<8x256xf32>
    %236 = arith.maximumf %234, %235 : vector<8x256xf32>
    %c0_10 = arith.constant 0 : index
    %c0_11 = arith.constant 0 : index
    %c0_12 = arith.constant 0 : index
    %c0_13 = arith.constant 0 : index
    %237 = vector.load %arg7[%c0_10, %c0_11, %c0_12, %c0_13] : memref<1x1x8x256xf32, #tpu.memory_space<vmem>>, vector<1x1x8x256xf32>
    %238 = vector.shape_cast %237 : vector<1x1x8x256xf32> to vector<8x256xf32>
    %239 = vector.shape_cast %236 : vector<8x256xf32> to vector<1x1x8x256xf32>
    tpu.vector_store %arg7[%c0_10, %c0_11, %c0_12, %c0_13], %239 {strides = array<i32>} : memref<1x1x8x256xf32, #tpu.memory_space<vmem>>, vector<1x1x8x256xf32>,
    return
  }
  func.func @transform_0(%arg0: i32, %arg1: i32, %arg2: i32) -> (i32, i32, i32, i32) {
    %c0_i32 = arith.constant 0 : i32
    %c0_i32_0 = arith.constant 0 : i32
    %c0_i32_1 = arith.constant 0 : i32
    return %arg0, %arg1, %c0_i32, %c0_i32_0 : i32, i32, i32, i32
  }
  func.func @transform_1(%arg0: i32, %arg1: i32, %arg2: i32) -> (i32, i32) {
    %c0_i32 = arith.constant 0 : i32
    %c0_i32_0 = arith.constant 0 : i32
    return %arg2, %c0_i32 : i32, i32
  }
  func.func @transform_2(%arg0: i32, %arg1: i32, %arg2: i32) -> (i32, i32) {
    %c0_i32 = arith.constant 0 : i32
    %c0_i32_0 = arith.constant 0 : i32
    return %arg2, %c0_i32 : i32, i32
  }
  func.func @transform_3(%arg0: i32, %arg1: i32, %arg2: i32) -> (i32, i32) {
    %c0_i32 = arith.constant 0 : i32
    %c0_i32_0 = arith.constant 0 : i32
    return %arg2, %c0_i32 : i32, i32
  }
  func.func @transform_4(%arg0: i32, %arg1: i32, %arg2: i32) -> (i32, i32, i32, i32) {
    %c0_i32 = arith.constant 0 : i32
    %c0_i32_0 = arith.constant 0 : i32
    return %arg0, %arg1, %arg2, %c0_i32 : i32, i32, i32, i32
  }
}

</mosaic_0001>

<llo_original>
// kernel: tpu_custom_call.1
$region0: #{tpu_custom_call.1}
  #allocation0 [shape = 'u32[]', space=smem, size = 0x4, offset = 0x4, fixed_abs, tag = 'smem constant byte address 0x4 - core index']
  #allocation1 [shape = 'u32[144,128]{1,0:T(1,128)}', space=vmem, size = 0x12000, scoped, tag = 'internal scratch']
  %s0 = inlined_call_operand.hbm [shape: f32[2,2,4,384], index: 0, kind: input, shape index: {}]
  %s1 = inlined_call_operand.vmem [shape: f32[8,36], index: 1, kind: input, shape index: {}]
  %s2 = inlined_call_operand.vmem [shape: f32[8,1], index: 2, kind: input, shape index: {}]
  %s3 = inlined_call_operand.vmem [shape: f32[8,1], index: 3, kind: input, shape index: {}]
  %s4 = inlined_call_operand.hbm [shape: f32[2,2,8,256], index: 4, kind: output, shape index: {}]
  %s5 = sld [smem:[#allocation0]]
  $region53: #{tpu_custom_call.1} parent=0
    _
  %s7 = ssub.s32 1, %s5
  %s8 = scalar_select 0, %s7, %s5
  $region1: #{tpu_custom_call.1} parent=0
    #allocation2 [shape = 'u8[12288]{0}', space=vmem, size = 0x3000, scoped, tag = 'input window, operand 0']
    #allocation3 [shape = 's32[2]{0}', space=sflag, size = 0x8, scoped, tag = 'scoped memory for tpu_custom_call.1']
    #allocation4 [shape = 's32[2]{0}', space=sflag, size = 0x8, scoped, tag = 'scoped memory for tpu_custom_call.1']
    #allocation5 [shape = 'u8[16384]{0}', space=vmem, size = 0x4000, scoped, tag = 'output window, operand 0']
    %9 = vsyncpa [#allocation3], 0
    %s10 = scalar_lea.sflag [#allocation3], 1
    %11 = vsyncpa %s10, 0
    %12 = vsyncpa [#allocation4], 0
    %s13 = scalar_lea.sflag [#allocation4], 1
    %14 = vsyncpa %s13, 0
    loop: start=0, step=1, limit=6
    $region2: #{tpu_custom_call.1} parent=1 // loop_pre_header
      _
    $region3: #{tpu_custom_call.1} parent=1 // loop_header
      %s16 = sphi 0, %s20
      %p17 = scmp.ge.s32.totalorder %s16, 6
      %s23 = sphi 0, %s42
      %s24 = sphi 0, %s38
      %s25 = sphi 0, %s34
      %s26 = sphi 0, %s23
      %s27 = sphi 0, %s24
      %s28 = sphi 0, %s25
      %s29 = sphi 0, %s26
      %s30 = sphi 0, %s27
      %s31 = sphi 0, %s28
      %s47 = sphi 0, %s49
      %s50 = sphi 0, %s47
      %s51 = sphi 0, %s50
      %s67 = sphi 0, %s51
      %s73 = sphi 0, %s75
      %s76 = sphi 0, %s73
      %s77 = sphi 0, %s76
      %s93 = sphi 0, %s77
      %s99 = sphi 0, %s101
      %s102 = sphi 0, %s99
      %s103 = sphi 0, %s102
      %s119 = sphi 0, %s103
      %s125 = sphi 0, %s127
      %s128 = sphi 0, %s125
      %s129 = sphi 0, %s128
      %s145 = sphi 0, %s129
      %s155 = sphi 0, %s157
      %s158 = sphi 0, %s155
      %s159 = sphi 0, %s158
      %s175 = sphi 0, %s159
    $region4: #{tpu_custom_call.1} parent=1 // loop_header_branch
      %19 = sbr.rel (%p17) target = $region8
    $region5: #{tpu_custom_call.1} parent=1 // loop_body
      %s21 = ssub.s32 %s16, 1
      %s22 = ssub.s32 %s16, 2
      %s32 = sadd.s32 1, %s25
      %p33 = scmp.ge.s32.totalorder %s32, 1
      %s34 = scalar_select %p33, 0, %s32
      %s35 = sadd.s32 1, %s24
      %s36 = scalar_select %p33, %s35, %s24
      %p37 = scmp.ge.s32.totalorder %s36, 2
      %s38 = scalar_select %p37, 0, %s36
      %s39 = sadd.s32 1, %s23
      %s40 = scalar_select %p37, %s39, %s23
      %p41 = scmp.ge.s32.totalorder %s40, 2
      %s42 = scalar_select %p41, 0, %s40
      %s43 = ssub.s32 %s23, %s42
      %s44 = ssub.s32 %s24, %s38
      %s45 = sor.u32 %s43, %s44
      %p46 = scmp.eq.s32.totalorder %s45, 0
      %s48 = sadd.s32 %s47, 1
      %s49 = scalar_select %p46, %s47, %s48
      %p52 = pneg %p46
      %p53 = scmp.eq.s32.totalorder %s16, 3
      %p54 = por %p52, %p53
      %p55 = scmp.ne.s32.totalorder %s47, %s50
      %p56 = scmp.eq.s32.totalorder %s16, 0
      %p57 = por %p55, %p56
      %p58 = scmp.ne.s32.totalorder %s47, %s50
      %p59 = scmp.eq.s32.totalorder %s21, 3
      %p60 = por %p58, %p59
      %p61 = scmp.ne.s32.totalorder %s50, %s51
      %p62 = scmp.eq.s32.totalorder %s21, 0
      %p63 = por %p61, %p62
      %p64 = scmp.ne.s32.totalorder %s50, %s51
      %p65 = scmp.eq.s32.totalorder %s22, 3
      %p66 = por %p64, %p65
      %p68 = scmp.ne.s32.totalorder %s51, %s67
      %p69 = scmp.eq.s32.totalorder %s22, 0
      %p70 = por %p68, %p69
      %s71 = ssub.s32 %s25, %s34
      %p72 = scmp.eq.s32.totalorder %s71, 0
      %s74 = sadd.s32 %s73, 1
      %s75 = scalar_select %p72, %s73, %s74
      %p78 = pneg %p72
      %p79 = scmp.eq.s32.totalorder %s16, 3
      %p80 = por %p78, %p79
      %p81 = scmp.ne.s32.totalorder %s73, %s76
      %p82 = scmp.eq.s32.totalorder %s16, 0
      %p83 = por %p81, %p82
      %p84 = scmp.ne.s32.totalorder %s73, %s76
      %p85 = scmp.eq.s32.totalorder %s21, 3
      %p86 = por %p84, %p85
      %p87 = scmp.ne.s32.totalorder %s76, %s77
      %p88 = scmp.eq.s32.totalorder %s21, 0
      %p89 = por %p87, %p88
      %p90 = scmp.ne.s32.totalorder %s76, %s77
      %p91 = scmp.eq.s32.totalorder %s22, 3
      %p92 = por %p90, %p91
      %p94 = scmp.ne.s32.totalorder %s77, %s93
      %p95 = scmp.eq.s32.totalorder %s22, 0
      %p96 = por %p94, %p95
      %s97 = ssub.s32 %s25, %s34
      %p98 = scmp.eq.s32.totalorder %s97, 0
      %s100 = sadd.s32 %s99, 1
      %s101 = scalar_select %p98, %s99, %s100
      %p104 = pneg %p98
      %p105 = scmp.eq.s32.totalorder %s16, 3
      %p106 = por %p104, %p105
      %p107 = scmp.ne.s32.totalorder %s99, %s102
      %p108 = scmp.eq.s32.totalorder %s16, 0
      %p109 = por %p107, %p108
      %p110 = scmp.ne.s32.totalorder %s99, %s102
      %p111 = scmp.eq.s32.totalorder %s21, 3
      %p112 = por %p110, %p111
      %p113 = scmp.ne.s32.totalorder %s102, %s103
      %p114 = scmp.eq.s32.totalorder %s21, 0
      %p115 = por %p113, %p114
      %p116 = scmp.ne.s32.totalorder %s102, %s103
      %p117 = scmp.eq.s32.totalorder %s22, 3
      %p118 = por %p116, %p117
      %p120 = scmp.ne.s32.totalorder %s103, %s119
      %p121 = scmp.eq.s32.totalorder %s22, 0
      %p122 = por %p120, %p121
      %s123 = ssub.s32 %s25, %s34
      %p124 = scmp.eq.s32.totalorder %s123, 0
      %s126 = sadd.s32 %s125, 1
      %s127 = scalar_select %p124, %s125, %s126
      %p130 = pneg %p124
      %p131 = scmp.eq.s32.totalorder %s16, 3
      %p132 = por %p130, %p131
      %p133 = scmp.ne.s32.totalorder %s125, %s128
      %p134 = scmp.eq.s32.totalorder %s16, 0
      %p135 = por %p133, %p134
      %p136 = scmp.ne.s32.totalorder %s125, %s128
      %p137 = scmp.eq.s32.totalorder %s21, 3
      %p138 = por %p136, %p137
      %p139 = scmp.ne.s32.totalorder %s128, %s129
      %p140 = scmp.eq.s32.totalorder %s21, 0
      %p141 = por %p139, %p140
      %p142 = scmp.ne.s32.totalorder %s128, %s129
      %p143 = scmp.eq.s32.totalorder %s22, 3
      %p144 = por %p142, %p143
      %p146 = scmp.ne.s32.totalorder %s129, %s145
      %p147 = scmp.eq.s32.totalorder %s22, 0
      %p148 = por %p146, %p147
      %s149 = ssub.s32 %s23, %s42
      %s150 = ssub.s32 %s24, %s38
      %s151 = sor.u32 %s149, %s150
      %s152 = ssub.s32 %s25, %s34
      %s153 = sor.u32 %s151, %s152
      %p154 = scmp.eq.s32.totalorder %s153, 0
      %s156 = sadd.s32 %s155, 1
      %s157 = scalar_select %p154, %s155, %s156
      %p160 = pneg %p154
      %p161 = scmp.eq.s32.totalorder %s16, 3
      %p162 = por %p160, %p161
      %p163 = scmp.ne.s32.totalorder %s155, %s158
      %p164 = scmp.eq.s32.totalorder %s16, 0
      %p165 = por %p163, %p164
      %p166 = scmp.ne.s32.totalorder %s155, %s158
      %p167 = scmp.eq.s32.totalorder %s21, 3
      %p168 = por %p166, %p167
      %p169 = scmp.ne.s32.totalorder %s158, %s159
      %p170 = scmp.eq.s32.totalorder %s21, 0
      %p171 = por %p169, %p170
      %p172 = scmp.ne.s32.totalorder %s158, %s159
      %p173 = scmp.eq.s32.totalorder %s22, 3
      %p174 = por %p172, %p173
      %p176 = scmp.ne.s32.totalorder %s159, %s175
      %p177 = scmp.eq.s32.totalorder %s22, 0
      %p178 = por %p176, %p177
      %p179 = scmp.le.s32.totalorder 1, %s16
      %p180 = scmp.lt.s32.totalorder %s16, 5
      %p181 = pnand %p179, %p180
      %p182 = pneg %p181
      // Predicated region
      $region9: #{tpu_custom_call.1} parent=5 // pred_check
        _
      $region10: #{tpu_custom_call.1} parent=5 // pred_check_branch
        %184 = sbr.rel (%p181) target = $region12
      $region11: #{tpu_custom_call.1} parent=5 // pred_region
        %s185 = ssub.s32 %s16, 1
        // Predicated region
        $region13: #{tpu_custom_call.1} parent=11 // pred_check
          %p186 = pneg %p89
        $region14: #{tpu_custom_call.1} parent=11 // pred_check_branch
          %188 = sbr.rel (%p186) target = $region16
        $region15: #{tpu_custom_call.1} parent=11 // pred_region
          %p189 = scmp.lt.s32.totalorder %s28, 0
          %s190 = scalar_select %p189, %s28, 0
          %s191 = smul.addr %s190, 8
          %s192 = scalar_lea.vmem %s1, %s191
        $region16: #{tpu_custom_call.1} parent=11 // pred_fallthru
          _
        // Predicated region
        $region17: #{tpu_custom_call.1} parent=11 // pred_check
          %p193 = pneg %p115
        $region18: #{tpu_custom_call.1} parent=11 // pred_check_branch
          %195 = sbr.rel (%p193) target = $region20
        $region19: #{tpu_custom_call.1} parent=11 // pred_region
          %p196 = scmp.lt.s32.totalorder %s28, 0
          %s197 = scalar_select %p196, %s28, 0
          %s198 = smul.addr %s197, 8
          %s199 = scalar_lea.vmem %s2, %s198
        $region20: #{tpu_custom_call.1} parent=11 // pred_fallthru
          _
        // Predicated region
        $region21: #{tpu_custom_call.1} parent=11 // pred_check
          %p200 = pneg %p141
        $region22: #{tpu_custom_call.1} parent=11 // pred_check_branch
          %202 = sbr.rel (%p200) target = $region24
        $region23: #{tpu_custom_call.1} parent=11 // pred_region
          %p203 = scmp.lt.s32.totalorder %s28, 0
          %s204 = scalar_select %p203, %s28, 0
          %s205 = smul.addr %s204, 8
          %s206 = scalar_lea.vmem %s3, %s205
        $region24: #{tpu_custom_call.1} parent=11 // pred_fallthru
          _
      $region12: #{tpu_custom_call.1} parent=5 // pred_fallthru
        _
      %p207 = scmp.lt.s32.totalorder %s16, 4
      // Predicated region
      $region25: #{tpu_custom_call.1} parent=5 // pred_check
        %p208 = pneg %p207
      $region26: #{tpu_custom_call.1} parent=5 // pred_check_branch
        %210 = sbr.rel (%p208) target = $region28
      $region27: #{tpu_custom_call.1} parent=5 // pred_region
        // Predicated region
        $region29: #{tpu_custom_call.1} parent=27 // pred_check
          %p211 = pneg %p57
        $region30: #{tpu_custom_call.1} parent=27 // pred_check_branch
          %213 = sbr.rel (%p211) target = $region32
        $region31: #{tpu_custom_call.1} parent=27 // pred_region
          %s214 = sand.u32 %s47, 1
          %s215 = scalar_lea.sflag [#allocation3], %s214
          %s216 = sand.u32 %s47, 1
          %s217 = smul.addr %s216, 12
          %s218 = scalar_lea.vmem [#allocation2], %s217
          %s220 = ssub.s32 192, 192
          %221 = vsyncadd %s215, %s220
          %s222 = smul.addr %s24, 3
          %s223 = smul.addr %s23, 6
          %s224 = sadd.s32 %s222, %s223
          %s225 = smul.addr %s224, 64
          %s226 = scalar_lea.hbm %s0, %s225
          %s228 = sshll.u32 %s218, 4
          %s229 = int_to_ptr.vmem [resolvable:$true] %s228
          %231 = dma.hbm_to_vmem [thread:$0]  %s226, 192, %s229, %s215
        $region32: #{tpu_custom_call.1} parent=27 // pred_fallthru
          _
      $region28: #{tpu_custom_call.1} parent=5 // pred_fallthru
        _
      %p232 = scmp.le.s32.totalorder 1, %s16
      %p233 = scmp.lt.s32.totalorder %s16, 5
      %p234 = pnand %p232, %p233
      %p235 = pneg %p234
      // Predicated region
      $region33: #{tpu_custom_call.1} parent=5 // pred_check
        _
      $region34: #{tpu_custom_call.1} parent=5 // pred_check_branch
        %237 = sbr.rel (%p234) target = $region36
      $region35: #{tpu_custom_call.1} parent=5 // pred_region
        %s238 = ssub.s32 %s16, 1
        %s239 = sand.u32 %s50, 1
        %s240 = scalar_lea.sflag [#allocation3], %s239
        %s241 = sand.u32 %s50, 1
        %s242 = smul.addr %s241, 12
        %s243 = scalar_lea.vmem [#allocation2], %s242
        // Predicated region
        $region37: #{tpu_custom_call.1} parent=35 // pred_check
          %p244 = pneg %p63
        $region38: #{tpu_custom_call.1} parent=35 // pred_check_branch
          %246 = sbr.rel (%p244) target = $region40
        $region39: #{tpu_custom_call.1} parent=35 // pred_region
          %247 = dma.done %s240, 192
        $region40: #{tpu_custom_call.1} parent=35 // pred_fallthru
          _
        %s248 = sand.u32 %s50, 1
        %s249 = scalar_lea.sflag [#allocation3], %s248
        %s250 = sand.u32 %s50, 1
        %s251 = smul.addr %s250, 12
        %s252 = scalar_lea.vmem [#allocation2], %s251
        %p253 = pneg %p63
        %p254 = pneg %p60
        %p255 = scmp.lt.s32.totalorder %s28, 0
        %s256 = scalar_select %p255, %s28, 0
        %s257 = smul.addr %s256, 8
        %s258 = scalar_lea.vmem %s1, %s257
        %p259 = pneg %p89
        %p260 = pneg %p86
        %p261 = scmp.lt.s32.totalorder %s28, 0
        %s262 = scalar_select %p261, %s28, 0
        %s263 = smul.addr %s262, 8
        %s264 = scalar_lea.vmem %s2, %s263
        %p265 = pneg %p115
        %p266 = pneg %p112
        %p267 = scmp.lt.s32.totalorder %s28, 0
        %s268 = scalar_select %p267, %s28, 0
        %s269 = smul.addr %s268, 8
        %s270 = scalar_lea.vmem %s3, %s269
        %p271 = pneg %p141
        %p272 = pneg %p138
        %p273 = pneg %p171
        %p274 = pneg %p168
        %s275 = sand.u32 %s158, 1
        %s276 = scalar_lea.sflag [#allocation4], %s275
        %s277 = sand.u32 %s158, 1
        %s278 = smul.addr %s277, 16
        %s279 = scalar_lea.vmem [#allocation5], %s278
        %p280 = scmp.lt.s32.totalorder %s28, 0
        %s281 = scalar_select %p280, %s28, 0
        %s282 = smul.addr %s281, 8
        %s283 = scalar_lea.vmem %s1, %s282
        %p284 = scmp.lt.s32.totalorder %s28, 0
        %s285 = scalar_select %p284, %s28, 0
        %s286 = smul.addr %s285, 8
        %s287 = scalar_lea.vmem %s2, %s286
        %p288 = scmp.lt.s32.totalorder %s28, 0
        %s289 = scalar_select %p288, %s28, 0
        %s290 = smul.addr %s289, 8
        %s291 = scalar_lea.vmem %s3, %s290
        %v292 = vld [vmem:[%s243] sm:$0xff]
        %v293 = vld [vmem:[%s243 + $0x8] sm:$0xf]
        %v294 = vld [vmem:[%s283] sm:$0xff]
        %296 = vset.pattern.permute.xlu0 0
        %297 = vperm.xlu0 %296, %v294
        %v298 = vpop.permute.xlu0 %297
        %v301 = vlaneseq
        %v302 = vshrl.u32 %v301, 7
        %v303 = vsub.s32 0, %v302
        %v304 = vrot.slane %v292, %v303
        %v305 = vlaneseq
        %v306 = vshrl.u32 %v305, 7
        %v307 = vsub.s32 4, %v306
        %v308 = vrot.slane %v292, %v307
        %v311 = vlaneseq
        %v312 = vshrl.u32 %v311, 7
        %v313 = vsub.s32 0, %v312
        %v314 = vrot.slane %v304, %v313
        %v315 = vlaneseq
        %v316 = vshrl.u32 %v315, 7
        %v317 = vsub.s32 0, %v316
        %v318 = vrot.slane %v308, %v317
        %v319 = vmul.f32 %v298, %v314
        %v320 = vmul.f32 %v298, %v318
        %v321 = vadd.f32 %v319, 0.0
        %v322 = vadd.f32 %v320, 0.0
        %323 = vset.pattern.permute.xlu0 1
        %324 = vperm.xlu0 %323, %v294
        %v325 = vpop.permute.xlu0 %324
        %v327 = vlaneseq
        %v328 = vshrl.u32 %v327, 7
        %v329 = vsub.s32 1, %v328
        %v330 = vrot.slane %v292, %v329
        %v331 = vlaneseq
        %v332 = vshrl.u32 %v331, 7
        %v333 = vsub.s32 5, %v332
        %v334 = vrot.slane %v292, %v333
        %v337 = vlaneseq
        %v338 = vshrl.u32 %v337, 7
        %v339 = vsub.s32 1, %v338
        %v340 = vrot.slane %v330, %v339
        %v341 = vlaneseq
        %v342 = vshrl.u32 %v341, 7
        %v343 = vsub.s32 1, %v342
        %v344 = vrot.slane %v334, %v343
        %v345 = vmul.f32 %v325, %v340
        %v346 = vmul.f32 %v325, %v344
        %v347 = vadd.f32 %v321, %v345
        %v348 = vadd.f32 %v322, %v346
        %349 = vset.pattern.permute.xlu0 2
        %350 = vperm.xlu0 %349, %v294
        %v351 = vpop.permute.xlu0 %350
        %v353 = vlaneseq
        %v354 = vshrl.u32 %v353, 7
        %v355 = vsub.s32 2, %v354
        %v356 = vrot.slane %v292, %v355
        %v357 = vlaneseq
        %v358 = vshrl.u32 %v357, 7
        %v359 = vsub.s32 6, %v358
        %v360 = vrot.slane %v292, %v359
        %v363 = vlaneseq
        %v364 = vshrl.u32 %v363, 7
        %v365 = vsub.s32 2, %v364
        %v366 = vrot.slane %v356, %v365
        %v367 = vlaneseq
        %v368 = vshrl.u32 %v367, 7
        %v369 = vsub.s32 2, %v368
        %v370 = vrot.slane %v360, %v369
        %v371 = vmul.f32 %v351, %v366
        %v372 = vmul.f32 %v351, %v370
        %v373 = vadd.f32 %v347, %v371
        %v374 = vadd.f32 %v348, %v372
        %375 = vset.pattern.permute.xlu0 3
        %376 = vperm.xlu0 %375, %v294
        %v377 = vpop.permute.xlu0 %376
        %v379 = vlaneseq
        %v380 = vshrl.u32 %v379, 7
        %v381 = vsub.s32 3, %v380
        %v382 = vrot.slane %v292, %v381
        %v383 = vlaneseq
        %v384 = vshrl.u32 %v383, 7
        %v385 = vsub.s32 7, %v384
        %v386 = vrot.slane %v292, %v385
        %v389 = vlaneseq
        %v390 = vshrl.u32 %v389, 7
        %v391 = vsub.s32 3, %v390
        %v392 = vrot.slane %v382, %v391
        %v393 = vlaneseq
        %v394 = vshrl.u32 %v393, 7
        %v395 = vsub.s32 3, %v394
        %v396 = vrot.slane %v386, %v395
        %v397 = vmul.f32 %v377, %v392
        %v398 = vmul.f32 %v377, %v396
        %v399 = vadd.f32 %v373, %v397
        %v400 = vadd.f32 %v374, %v398
        %401 = vset.pattern.permute.xlu0 4
        %402 = vperm.xlu0 %401, %v294
        %v403 = vpop.permute.xlu0 %402
        %v406 = vlaneseq
        %v407 = vshrl.u32 %v406, 7
        %v408 = vsub.s32 0, %v407
        %v409 = vrot.slane %v293, %v408
        %v411 = vlaneseq
        %v412 = vshrl.u32 %v411, 7
        %v413 = vsub.s32 0, %v412
        %v414 = vrot.slane %v409, %v413
        %v415 = vmul.f32 %v403, %v314
        %v416 = vmul.f32 %v403, %v318
        %v417 = vmul.f32 %v403, %v414
        %421 = vrot.lane.b32.xlu0 %v415, 127
        %v422 = vpop.permute.xlu0 %421
        %423 = vrot.lane.b32.xlu0 %v416, 127
        %v424 = vpop.permute.xlu0 %423
        %425 = vrot.lane.b32.xlu0 %v417, 127
        %v426 = vpop.permute.xlu0 %425
        %vm427 = vcmask 1039360
        %v428 = vsel %vm427, %v422, %v424
        %v429 = vsel %vm427, %v424, %v426
        %v432 = vadd.f32 %v399, %v428
        %v433 = vadd.f32 %v400, %v429
        %434 = vset.pattern.permute.xlu0 5
        %435 = vperm.xlu0 %434, %v294
        %v436 = vpop.permute.xlu0 %435
        %v438 = vlaneseq
        %v439 = vshrl.u32 %v438, 7
        %v440 = vsub.s32 1, %v439
        %v441 = vrot.slane %v293, %v440
        %v443 = vlaneseq
        %v444 = vshrl.u32 %v443, 7
        %v445 = vsub.s32 1, %v444
        %v446 = vrot.slane %v441, %v445
        %v447 = vmul.f32 %v436, %v340
        %v448 = vmul.f32 %v436, %v344
        %v449 = vmul.f32 %v436, %v446
        %453 = vrot.lane.b32.xlu0 %v447, 127
        %v454 = vpop.permute.xlu0 %453
        %455 = vrot.lane.b32.xlu0 %v448, 127
        %v456 = vpop.permute.xlu0 %455
        %457 = vrot.lane.b32.xlu0 %v449, 127
        %v458 = vpop.permute.xlu0 %457
        %v459 = vsel %vm427, %v454, %v456
        %v460 = vsel %vm427, %v456, %v458
        %v463 = vadd.f32 %v432, %v459
        %v464 = vadd.f32 %v433, %v460
        %465 = vset.pattern.permute.xlu0 6
        %466 = vperm.xlu0 %465, %v294
        %v467 = vpop.permute.xlu0 %466
        %v469 = vlaneseq
        %v470 = vshrl.u32 %v469, 7
        %v471 = vsub.s32 2, %v470
        %v472 = vrot.slane %v293, %v471
        %v474 = vlaneseq
        %v475 = vshrl.u32 %v474, 7
        %v476 = vsub.s32 2, %v475
        %v477 = vrot.slane %v472, %v476
        %v478 = vmul.f32 %v467, %v366
        %v479 = vmul.f32 %v467, %v370
        %v480 = vmul.f32 %v467, %v477
        %484 = vrot.lane.b32.xlu0 %v478, 127
        %v485 = vpop.permute.xlu0 %484
        %486 = vrot.lane.b32.xlu0 %v479, 127
        %v487 = vpop.permute.xlu0 %486
        %488 = vrot.lane.b32.xlu0 %v480, 127
        %v489 = vpop.permute.xlu0 %488
        %v490 = vsel %vm427, %v485, %v487
        %v491 = vsel %vm427, %v487, %v489
        %v494 = vadd.f32 %v463, %v490
        %v495 = vadd.f32 %v464, %v491
        %496 = vset.pattern.permute.xlu0 7
        %497 = vperm.xlu0 %496, %v294
        %v498 = vpop.permute.xlu0 %497
        %v500 = vlaneseq
        %v501 = vshrl.u32 %v500, 7
        %v502 = vsub.s32 3, %v501
        %v503 = vrot.slane %v293, %v502
        %v505 = vlaneseq
        %v506 = vshrl.u32 %v505, 7
        %v507 = vsub.s32 3, %v506
        %v508 = vrot.slane %v503, %v507
        %v509 = vmul.f32 %v498, %v392
        %v510 = vmul.f32 %v498, %v396
        %v511 = vmul.f32 %v498, %v508
        %515 = vrot.lane.b32.xlu0 %v509, 127
        %v516 = vpop.permute.xlu0 %515
        %517 = vrot.lane.b32.xlu0 %v510, 127
        %v518 = vpop.permute.xlu0 %517
        %519 = vrot.lane.b32.xlu0 %v511, 127
        %v520 = vpop.permute.xlu0 %519
        %v521 = vsel %vm427, %v516, %v518
        %v522 = vsel %vm427, %v518, %v520
        %v525 = vadd.f32 %v494, %v521
        %v526 = vadd.f32 %v495, %v522
        %527 = vset.pattern.permute.xlu0 8
        %528 = vperm.xlu0 %527, %v294
        %v529 = vpop.permute.xlu0 %528
        %v531 = vmul.f32 %v529, %v314
        %v532 = vmul.f32 %v529, %v318
        %v533 = vmul.f32 %v529, %v414
        %537 = vrot.lane.b32.xlu0 %v531, 126
        %v538 = vpop.permute.xlu0 %537
        %539 = vrot.lane.b32.xlu0 %v532, 126
        %v540 = vpop.permute.xlu0 %539
        %541 = vrot.lane.b32.xlu0 %v533, 126
        %v542 = vpop.permute.xlu0 %541
        %vm543 = vcmask 1031168
        %v544 = vsel %vm543, %v538, %v540
        %v545 = vsel %vm543, %v540, %v542
        %v548 = vadd.f32 %v525, %v544
        %v549 = vadd.f32 %v526, %v545
        %550 = vset.pattern.permute.xlu0 9
        %551 = vperm.xlu0 %550, %v294
        %v552 = vpop.permute.xlu0 %551
        %v554 = vmul.f32 %v552, %v340
        %v555 = vmul.f32 %v552, %v344
        %v556 = vmul.f32 %v552, %v446
        %560 = vrot.lane.b32.xlu0 %v554, 126
        %v561 = vpop.permute.xlu0 %560
        %562 = vrot.lane.b32.xlu0 %v555, 126
        %v563 = vpop.permute.xlu0 %562
        %564 = vrot.lane.b32.xlu0 %v556, 126
        %v565 = vpop.permute.xlu0 %564
        %v566 = vsel %vm543, %v561, %v563
        %v567 = vsel %vm543, %v563, %v565
        %v570 = vadd.f32 %v548, %v566
        %v571 = vadd.f32 %v549, %v567
        %572 = vset.pattern.permute.xlu0 10
        %573 = vperm.xlu0 %572, %v294
        %v574 = vpop.permute.xlu0 %573
        %v576 = vmul.f32 %v574, %v366
        %v577 = vmul.f32 %v574, %v370
        %v578 = vmul.f32 %v574, %v477
        %582 = vrot.lane.b32.xlu0 %v576, 126
        %v583 = vpop.permute.xlu0 %582
        %584 = vrot.lane.b32.xlu0 %v577, 126
        %v585 = vpop.permute.xlu0 %584
        %586 = vrot.lane.b32.xlu0 %v578, 126
        %v587 = vpop.permute.xlu0 %586
        %v588 = vsel %vm543, %v583, %v585
        %v589 = vsel %vm543, %v585, %v587
        %v592 = vadd.f32 %v570, %v588
        %v593 = vadd.f32 %v571, %v589
        %594 = vset.pattern.permute.xlu0 11
        %595 = vperm.xlu0 %594, %v294
        %v596 = vpop.permute.xlu0 %595
        %v598 = vmul.f32 %v596, %v392
        %v599 = vmul.f32 %v596, %v396
        %v600 = vmul.f32 %v596, %v508
        %604 = vrot.lane.b32.xlu0 %v598, 126
        %v605 = vpop.permute.xlu0 %604
        %606 = vrot.lane.b32.xlu0 %v599, 126
        %v607 = vpop.permute.xlu0 %606
        %608 = vrot.lane.b32.xlu0 %v600, 126
        %v609 = vpop.permute.xlu0 %608
        %v610 = vsel %vm543, %v605, %v607
        %v611 = vsel %vm543, %v607, %v609
        %v614 = vadd.f32 %v592, %v610
        %v615 = vadd.f32 %v593, %v611
        %616 = vset.pattern.permute.xlu0 12
        %617 = vperm.xlu0 %616, %v294
        %v618 = vpop.permute.xlu0 %617
        %v620 = vmul.f32 %v618, %v314
        %v621 = vmul.f32 %v618, %v318
        %v622 = vmul.f32 %v618, %v414
        %626 = vrot.lane.b32.xlu0 %v620, 110
        %v627 = vpop.permute.xlu0 %626
        %628 = vrot.lane.b32.xlu0 %v621, 110
        %v629 = vpop.permute.xlu0 %628
        %630 = vrot.lane.b32.xlu0 %v622, 110
        %v631 = vpop.permute.xlu0 %630
        %vm632 = vcmask 900096
        %v633 = vsel %vm632, %v627, %v629
        %v634 = vsel %vm632, %v629, %v631
        %v637 = vadd.f32 %v614, %v633
        %v638 = vadd.f32 %v615, %v634
        %639 = vset.pattern.permute.xlu0 13
        %640 = vperm.xlu0 %639, %v294
        %v641 = vpop.permute.xlu0 %640
        %v643 = vmul.f32 %v641, %v340
        %v644 = vmul.f32 %v641, %v344
        %v645 = vmul.f32 %v641, %v446
        %649 = vrot.lane.b32.xlu0 %v643, 110
        %v650 = vpop.permute.xlu0 %649
        %651 = vrot.lane.b32.xlu0 %v644, 110
        %v652 = vpop.permute.xlu0 %651
        %653 = vrot.lane.b32.xlu0 %v645, 110
        %v654 = vpop.permute.xlu0 %653
        %v655 = vsel %vm632, %v650, %v652
        %v656 = vsel %vm632, %v652, %v654
        %v659 = vadd.f32 %v637, %v655
        %v660 = vadd.f32 %v638, %v656
        %661 = vset.pattern.permute.xlu0 14
        %662 = vperm.xlu0 %661, %v294
        %v663 = vpop.permute.xlu0 %662
        %v665 = vmul.f32 %v663, %v366
        %v666 = vmul.f32 %v663, %v370
        %v667 = vmul.f32 %v663, %v477
        %671 = vrot.lane.b32.xlu0 %v665, 110
        %v672 = vpop.permute.xlu0 %671
        %673 = vrot.lane.b32.xlu0 %v666, 110
        %v674 = vpop.permute.xlu0 %673
        %675 = vrot.lane.b32.xlu0 %v667, 110
        %v676 = vpop.permute.xlu0 %675
        %v677 = vsel %vm632, %v672, %v674
        %v678 = vsel %vm632, %v674, %v676
        %v681 = vadd.f32 %v659, %v677
        %v682 = vadd.f32 %v660, %v678
        %683 = vset.pattern.permute.xlu0 15
        %684 = vperm.xlu0 %683, %v294
        %v685 = vpop.permute.xlu0 %684
        %v687 = vmul.f32 %v685, %v392
        %v688 = vmul.f32 %v685, %v396
        %v689 = vmul.f32 %v685, %v508
        %693 = vrot.lane.b32.xlu0 %v687, 110
        %v694 = vpop.permute.xlu0 %693
        %695 = vrot.lane.b32.xlu0 %v688, 110
        %v696 = vpop.permute.xlu0 %695
        %697 = vrot.lane.b32.xlu0 %v689, 110
        %v698 = vpop.permute.xlu0 %697
        %v699 = vsel %vm632, %v694, %v696
        %v700 = vsel %vm632, %v696, %v698
        %v703 = vadd.f32 %v681, %v699
        %v704 = vadd.f32 %v682, %v700
        %705 = vset.pattern.permute.xlu0 16
        %706 = vperm.xlu0 %705, %v294
        %v707 = vpop.permute.xlu0 %706
        %v709 = vmul.f32 %v707, %v314
        %v710 = vmul.f32 %v707, %v318
        %v711 = vmul.f32 %v707, %v414
        %715 = vrot.lane.b32.xlu0 %v709, 109
        %v716 = vpop.permute.xlu0 %715
        %717 = vrot.lane.b32.xlu0 %v710, 109
        %v718 = vpop.permute.xlu0 %717
        %719 = vrot.lane.b32.xlu0 %v711, 109
        %v720 = vpop.permute.xlu0 %719
        %vm721 = vcmask 891904
        %v722 = vsel %vm721, %v716, %v718
        %v723 = vsel %vm721, %v718, %v720
        %v726 = vadd.f32 %v703, %v722
        %v727 = vadd.f32 %v704, %v723
        %728 = vset.pattern.permute.xlu0 17
        %729 = vperm.xlu0 %728, %v294
        %v730 = vpop.permute.xlu0 %729
        %v732 = vmul.f32 %v730, %v340
        %v733 = vmul.f32 %v730, %v344
        %v734 = vmul.f32 %v730, %v446
        %738 = vrot.lane.b32.xlu0 %v732, 109
        %v739 = vpop.permute.xlu0 %738
        %740 = vrot.lane.b32.xlu0 %v733, 109
        %v741 = vpop.permute.xlu0 %740
        %742 = vrot.lane.b32.xlu0 %v734, 109
        %v743 = vpop.permute.xlu0 %742
        %v744 = vsel %vm721, %v739, %v741
        %v745 = vsel %vm721, %v741, %v743
        %v748 = vadd.f32 %v726, %v744
        %v749 = vadd.f32 %v727, %v745
        %750 = vset.pattern.permute.xlu0 18
        %751 = vperm.xlu0 %750, %v294
        %v752 = vpop.permute.xlu0 %751
        %v754 = vmul.f32 %v752, %v366
        %v755 = vmul.f32 %v752, %v370
        %v756 = vmul.f32 %v752, %v477
        %760 = vrot.lane.b32.xlu0 %v754, 109
        %v761 = vpop.permute.xlu0 %760
        %762 = vrot.lane.b32.xlu0 %v755, 109
        %v763 = vpop.permute.xlu0 %762
        %764 = vrot.lane.b32.xlu0 %v756, 109
        %v765 = vpop.permute.xlu0 %764
        %v766 = vsel %vm721, %v761, %v763
        %v767 = vsel %vm721, %v763, %v765
        %v770 = vadd.f32 %v748, %v766
        %v771 = vadd.f32 %v749, %v767
        %772 = vset.pattern.permute.xlu0 19
        %773 = vperm.xlu0 %772, %v294
        %v774 = vpop.permute.xlu0 %773
        %v776 = vmul.f32 %v774, %v392
        %v777 = vmul.f32 %v774, %v396
        %v778 = vmul.f32 %v774, %v508
        %782 = vrot.lane.b32.xlu0 %v776, 109
        %v783 = vpop.permute.xlu0 %782
        %784 = vrot.lane.b32.xlu0 %v777, 109
        %v785 = vpop.permute.xlu0 %784
        %786 = vrot.lane.b32.xlu0 %v778, 109
        %v787 = vpop.permute.xlu0 %786
        %v788 = vsel %vm721, %v783, %v785
        %v789 = vsel %vm721, %v785, %v787
        %v792 = vadd.f32 %v770, %v788
        %v793 = vadd.f32 %v771, %v789
        %794 = vset.pattern.permute.xlu0 20
        %795 = vperm.xlu0 %794, %v294
        %v796 = vpop.permute.xlu0 %795
        %v798 = vmul.f32 %v796, %v314
        %v799 = vmul.f32 %v796, %v318
        %v800 = vmul.f32 %v796, %v414
        %804 = vrot.lane.b32.xlu0 %v798, 108
        %v805 = vpop.permute.xlu0 %804
        %806 = vrot.lane.b32.xlu0 %v799, 108
        %v807 = vpop.permute.xlu0 %806
        %808 = vrot.lane.b32.xlu0 %v800, 108
        %v809 = vpop.permute.xlu0 %808
        %vm810 = vcmask 883712
        %v811 = vsel %vm810, %v805, %v807
        %v812 = vsel %vm810, %v807, %v809
        %v815 = vadd.f32 %v792, %v811
        %v816 = vadd.f32 %v793, %v812
        %817 = vset.pattern.permute.xlu0 21
        %818 = vperm.xlu0 %817, %v294
        %v819 = vpop.permute.xlu0 %818
        %v821 = vmul.f32 %v819, %v340
        %v822 = vmul.f32 %v819, %v344
        %v823 = vmul.f32 %v819, %v446
        %827 = vrot.lane.b32.xlu0 %v821, 108
        %v828 = vpop.permute.xlu0 %827
        %829 = vrot.lane.b32.xlu0 %v822, 108
        %v830 = vpop.permute.xlu0 %829
        %831 = vrot.lane.b32.xlu0 %v823, 108
        %v832 = vpop.permute.xlu0 %831
        %v833 = vsel %vm810, %v828, %v830
        %v834 = vsel %vm810, %v830, %v832
        %v837 = vadd.f32 %v815, %v833
        %v838 = vadd.f32 %v816, %v834
        %839 = vset.pattern.permute.xlu0 22
        %840 = vperm.xlu0 %839, %v294
        %v841 = vpop.permute.xlu0 %840
        %v843 = vmul.f32 %v841, %v366
        %v844 = vmul.f32 %v841, %v370
        %v845 = vmul.f32 %v841, %v477
        %849 = vrot.lane.b32.xlu0 %v843, 108
        %v850 = vpop.permute.xlu0 %849
        %851 = vrot.lane.b32.xlu0 %v844, 108
        %v852 = vpop.permute.xlu0 %851
        %853 = vrot.lane.b32.xlu0 %v845, 108
        %v854 = vpop.permute.xlu0 %853
        %v855 = vsel %vm810, %v850, %v852
        %v856 = vsel %vm810, %v852, %v854
        %v859 = vadd.f32 %v837, %v855
        %v860 = vadd.f32 %v838, %v856
        %861 = vset.pattern.permute.xlu0 23
        %862 = vperm.xlu0 %861, %v294
        %v863 = vpop.permute.xlu0 %862
        %v865 = vmul.f32 %v863, %v392
        %v866 = vmul.f32 %v863, %v396
        %v867 = vmul.f32 %v863, %v508
        %871 = vrot.lane.b32.xlu0 %v865, 108
        %v872 = vpop.permute.xlu0 %871
        %873 = vrot.lane.b32.xlu0 %v866, 108
        %v874 = vpop.permute.xlu0 %873
        %875 = vrot.lane.b32.xlu0 %v867, 108
        %v876 = vpop.permute.xlu0 %875
        %v877 = vsel %vm810, %v872, %v874
        %v878 = vsel %vm810, %v874, %v876
        %v881 = vadd.f32 %v859, %v877
        %v882 = vadd.f32 %v860, %v878
        %883 = vset.pattern.permute.xlu0 24
        %884 = vperm.xlu0 %883, %v294
        %v885 = vpop.permute.xlu0 %884
        %v887 = vmul.f32 %v885, %v314
        %v888 = vmul.f32 %v885, %v318
        %v889 = vmul.f32 %v885, %v414
        %893 = vrot.lane.b32.xlu0 %v887, 92
        %v894 = vpop.permute.xlu0 %893
        %895 = vrot.lane.b32.xlu0 %v888, 92
        %v896 = vpop.permute.xlu0 %895
        %897 = vrot.lane.b32.xlu0 %v889, 92
        %v898 = vpop.permute.xlu0 %897
        %vm899 = vcmask 752640
        %v900 = vsel %vm899, %v894, %v896
        %v901 = vsel %vm899, %v896, %v898
        %v904 = vadd.f32 %v881, %v900
        %v905 = vadd.f32 %v882, %v901
        %906 = vset.pattern.permute.xlu0 25
        %907 = vperm.xlu0 %906, %v294
        %v908 = vpop.permute.xlu0 %907
        %v910 = vmul.f32 %v908, %v340
        %v911 = vmul.f32 %v908, %v344
        %v912 = vmul.f32 %v908, %v446
        %916 = vrot.lane.b32.xlu0 %v910, 92
        %v917 = vpop.permute.xlu0 %916
        %918 = vrot.lane.b32.xlu0 %v911, 92
        %v919 = vpop.permute.xlu0 %918
        %920 = vrot.lane.b32.xlu0 %v912, 92
        %v921 = vpop.permute.xlu0 %920
        %v922 = vsel %vm899, %v917, %v919
        %v923 = vsel %vm899, %v919, %v921
        %v926 = vadd.f32 %v904, %v922
        %v927 = vadd.f32 %v905, %v923
        %928 = vset.pattern.permute.xlu0 26
        %929 = vperm.xlu0 %928, %v294
        %v930 = vpop.permute.xlu0 %929
        %v932 = vmul.f32 %v930, %v366
        %v933 = vmul.f32 %v930, %v370
        %v934 = vmul.f32 %v930, %v477
        %938 = vrot.lane.b32.xlu0 %v932, 92
        %v939 = vpop.permute.xlu0 %938
        %940 = vrot.lane.b32.xlu0 %v933, 92
        %v941 = vpop.permute.xlu0 %940
        %942 = vrot.lane.b32.xlu0 %v934, 92
        %v943 = vpop.permute.xlu0 %942
        %v944 = vsel %vm899, %v939, %v941
        %v945 = vsel %vm899, %v941, %v943
        %v948 = vadd.f32 %v926, %v944
        %v949 = vadd.f32 %v927, %v945
        %950 = vset.pattern.permute.xlu0 27
        %951 = vperm.xlu0 %950, %v294
        %v952 = vpop.permute.xlu0 %951
        %v954 = vmul.f32 %v952, %v392
        %v955 = vmul.f32 %v952, %v396
        %v956 = vmul.f32 %v952, %v508
        %960 = vrot.lane.b32.xlu0 %v954, 92
        %v961 = vpop.permute.xlu0 %960
        %962 = vrot.lane.b32.xlu0 %v955, 92
        %v963 = vpop.permute.xlu0 %962
        %964 = vrot.lane.b32.xlu0 %v956, 92
        %v965 = vpop.permute.xlu0 %964
        %v966 = vsel %vm899, %v961, %v963
        %v967 = vsel %vm899, %v963, %v965
        %v970 = vadd.f32 %v948, %v966
        %v971 = vadd.f32 %v949, %v967
        %972 = vset.pattern.permute.xlu0 28
        %973 = vperm.xlu0 %972, %v294
        %v974 = vpop.permute.xlu0 %973
        %v976 = vmul.f32 %v974, %v314
        %v977 = vmul.f32 %v974, %v318
        %v978 = vmul.f32 %v974, %v414
        %982 = vrot.lane.b32.xlu0 %v976, 91
        %v983 = vpop.permute.xlu0 %982
        %984 = vrot.lane.b32.xlu0 %v977, 91
        %v985 = vpop.permute.xlu0 %984
        %986 = vrot.lane.b32.xlu0 %v978, 91
        %v987 = vpop.permute.xlu0 %986
        %vm988 = vcmask 744448
        %v989 = vsel %vm988, %v983, %v985
        %v990 = vsel %vm988, %v985, %v987
        %v993 = vadd.f32 %v970, %v989
        %v994 = vadd.f32 %v971, %v990
        %995 = vset.pattern.permute.xlu0 29
        %996 = vperm.xlu0 %995, %v294
        %v997 = vpop.permute.xlu0 %996
        %v999 = vmul.f32 %v997, %v340
        %v1000 = vmul.f32 %v997, %v344
        %v1001 = vmul.f32 %v997, %v446
        %1005 = vrot.lane.b32.xlu0 %v999, 91
        %v1006 = vpop.permute.xlu0 %1005
        %1007 = vrot.lane.b32.xlu0 %v1000, 91
        %v1008 = vpop.permute.xlu0 %1007
        %1009 = vrot.lane.b32.xlu0 %v1001, 91
        %v1010 = vpop.permute.xlu0 %1009
        %v1011 = vsel %vm988, %v1006, %v1008
        %v1012 = vsel %vm988, %v1008, %v1010
        %v1015 = vadd.f32 %v993, %v1011
        %v1016 = vadd.f32 %v994, %v1012
        %1017 = vset.pattern.permute.xlu0 30
        %1018 = vperm.xlu0 %1017, %v294
        %v1019 = vpop.permute.xlu0 %1018
        %v1021 = vmul.f32 %v1019, %v366
        %v1022 = vmul.f32 %v1019, %v370
        %v1023 = vmul.f32 %v1019, %v477
        %1027 = vrot.lane.b32.xlu0 %v1021, 91
        %v1028 = vpop.permute.xlu0 %1027
        %1029 = vrot.lane.b32.xlu0 %v1022, 91
        %v1030 = vpop.permute.xlu0 %1029
        %1031 = vrot.lane.b32.xlu0 %v1023, 91
        %v1032 = vpop.permute.xlu0 %1031
        %v1033 = vsel %vm988, %v1028, %v1030
        %v1034 = vsel %vm988, %v1030, %v1032
        %v1037 = vadd.f32 %v1015, %v1033
        %v1038 = vadd.f32 %v1016, %v1034
        %1039 = vset.pattern.permute.xlu0 31
        %1040 = vperm.xlu0 %1039, %v294
        %v1041 = vpop.permute.xlu0 %1040
        %v1043 = vmul.f32 %v1041, %v392
        %v1044 = vmul.f32 %v1041, %v396
        %v1045 = vmul.f32 %v1041, %v508
        %1049 = vrot.lane.b32.xlu0 %v1043, 91
        %v1050 = vpop.permute.xlu0 %1049
        %1051 = vrot.lane.b32.xlu0 %v1044, 91
        %v1052 = vpop.permute.xlu0 %1051
        %1053 = vrot.lane.b32.xlu0 %v1045, 91
        %v1054 = vpop.permute.xlu0 %1053
        %v1055 = vsel %vm988, %v1050, %v1052
        %v1056 = vsel %vm988, %v1052, %v1054
        %v1059 = vadd.f32 %v1037, %v1055
        %v1060 = vadd.f32 %v1038, %v1056
        %1061 = vset.pattern.permute.xlu0 32
        %1062 = vperm.xlu0 %1061, %v294
        %v1063 = vpop.permute.xlu0 %1062
        %v1065 = vmul.f32 %v1063, %v314
        %v1066 = vmul.f32 %v1063, %v318
        %v1067 = vmul.f32 %v1063, %v414
        %1071 = vrot.lane.b32.xlu0 %v1065, 90
        %v1072 = vpop.permute.xlu0 %1071
        %1073 = vrot.lane.b32.xlu0 %v1066, 90
        %v1074 = vpop.permute.xlu0 %1073
        %1075 = vrot.lane.b32.xlu0 %v1067, 90
        %v1076 = vpop.permute.xlu0 %1075
        %vm1077 = vcmask 736256
        %v1078 = vsel %vm1077, %v1072, %v1074
        %v1079 = vsel %vm1077, %v1074, %v1076
        %v1082 = vadd.f32 %v1059, %v1078
        %v1083 = vadd.f32 %v1060, %v1079
        %1084 = vset.pattern.permute.xlu0 33
        %1085 = vperm.xlu0 %1084, %v294
        %v1086 = vpop.permute.xlu0 %1085
        %v1088 = vmul.f32 %v1086, %v340
        %v1089 = vmul.f32 %v1086, %v344
        %v1090 = vmul.f32 %v1086, %v446
        %1094 = vrot.lane.b32.xlu0 %v1088, 90
        %v1095 = vpop.permute.xlu0 %1094
        %1096 = vrot.lane.b32.xlu0 %v1089, 90
        %v1097 = vpop.permute.xlu0 %1096
        %1098 = vrot.lane.b32.xlu0 %v1090, 90
        %v1099 = vpop.permute.xlu0 %1098
        %v1100 = vsel %vm1077, %v1095, %v1097
        %v1101 = vsel %vm1077, %v1097, %v1099
        %v1104 = vadd.f32 %v1082, %v1100
        %v1105 = vadd.f32 %v1083, %v1101
        %1106 = vset.pattern.permute.xlu0 34
        %1107 = vperm.xlu0 %1106, %v294
        %v1108 = vpop.permute.xlu0 %1107
        %v1110 = vmul.f32 %v1108, %v366
        %v1111 = vmul.f32 %v1108, %v370
        %v1112 = vmul.f32 %v1108, %v477
        %1116 = vrot.lane.b32.xlu0 %v1110, 90
        %v1117 = vpop.permute.xlu0 %1116
        %1118 = vrot.lane.b32.xlu0 %v1111, 90
        %v1119 = vpop.permute.xlu0 %1118
        %1120 = vrot.lane.b32.xlu0 %v1112, 90
        %v1121 = vpop.permute.xlu0 %1120
        %v1122 = vsel %vm1077, %v1117, %v1119
        %v1123 = vsel %vm1077, %v1119, %v1121
        %v1126 = vadd.f32 %v1104, %v1122
        %v1127 = vadd.f32 %v1105, %v1123
        %1128 = vset.pattern.permute.xlu0 35
        %1129 = vperm.xlu0 %1128, %v294
        %v1130 = vpop.permute.xlu0 %1129
        %v1132 = vmul.f32 %v1130, %v392
        %v1133 = vmul.f32 %v1130, %v396
        %v1134 = vmul.f32 %v1130, %v508
        %1138 = vrot.lane.b32.xlu0 %v1132, 90
        %v1139 = vpop.permute.xlu0 %1138
        %1140 = vrot.lane.b32.xlu0 %v1133, 90
        %v1141 = vpop.permute.xlu0 %1140
        %1142 = vrot.lane.b32.xlu0 %v1134, 90
        %v1143 = vpop.permute.xlu0 %1142
        %v1144 = vsel %vm1077, %v1139, %v1141
        %v1145 = vsel %vm1077, %v1141, %v1143
        %v1148 = vadd.f32 %v1126, %v1144
        %v1149 = vadd.f32 %v1127, %v1145
        %v1150 = vld [vmem:[%s287] sm:$0xff]
        %1152 = vset.pattern.permute.xlu0 0
        %1153 = vperm.xlu0 %1152, %v1150
        %v1154 = vpop.permute.xlu0 %1153
        %v1156 = vmul.f32 %v1148, %v1154
        %v1157 = vmul.f32 %v1149, %v1154
        %v1158 = vld [vmem:[%s291] sm:$0xff]
        %1160 = vset.pattern.permute.xlu0 0
        %1161 = vperm.xlu0 %1160, %v1158
        %v1162 = vpop.permute.xlu0 %1161
        %v1164 = vadd.f32 %v1156, %v1162
        %v1165 = vadd.f32 %v1157, %v1162
        %v1166 = vmax.f32 %v1164, 0.0
        %v1167 = vmax.f32 %v1165, 0.0
        %1168 = vst [vmem:[%s279] sm:$0xff] %v1166
        %1169 = vst [vmem:[%s279 + $0x8] sm:$0xff] %v1167
        %s1170 = sand.u32 %s158, 1
        %s1171 = scalar_lea.sflag [#allocation4], %s1170
        %s1172 = sand.u32 %s158, 1
        %s1173 = smul.addr %s1172, 16
        %s1174 = scalar_lea.vmem [#allocation5], %s1173
        // Predicated region
        $region41: #{tpu_custom_call.1} parent=35 // pred_check
          %p1175 = pneg %p168
        $region42: #{tpu_custom_call.1} parent=35 // pred_check_branch
          %1177 = sbr.rel (%p1175) target = $region44
        $region43: #{tpu_custom_call.1} parent=35 // pred_region
          %s1179 = ssub.s32 256, 256
          %1180 = vsyncadd %s1171, %s1179
          %s1181 = smul.addr %s28, 2
          %s1182 = smul.addr %s27, 2
          %s1183 = sadd.s32 %s1181, %s1182
          %s1184 = smul.addr %s26, 4
          %s1185 = sadd.s32 %s1183, %s1184
          %s1186 = smul.addr %s1185, 128
          %s1187 = scalar_lea.hbm %s4, %s1186
          %s1189 = sshll.u32 %s1174, 4
          %s1190 = int_to_ptr.vmem [resolvable:$true] %s1189
          %1192 = dma.vmem_to_hbm [thread:$0]  %s1190, 256, %s1187, %s1171
        $region44: #{tpu_custom_call.1} parent=35 // pred_fallthru
          _
      $region36: #{tpu_custom_call.1} parent=5 // pred_fallthru
        _
      %p1193 = scmp.le.s32.totalorder 2, %s16
      // Predicated region
      $region45: #{tpu_custom_call.1} parent=5 // pred_check
        %p1194 = pneg %p1193
      $region46: #{tpu_custom_call.1} parent=5 // pred_check_branch
        %1196 = sbr.rel (%p1194) target = $region48
      $region47: #{tpu_custom_call.1} parent=5 // pred_region
        %s1197 = ssub.s32 %s16, 2
        // Predicated region
        $region49: #{tpu_custom_call.1} parent=47 // pred_check
          %p1198 = pneg %p174
        $region50: #{tpu_custom_call.1} parent=47 // pred_check_branch
          %1200 = sbr.rel (%p1198) target = $region52
        $region51: #{tpu_custom_call.1} parent=47 // pred_region
          %s1201 = sand.u32 %s159, 1
          %s1202 = scalar_lea.sflag [#allocation4], %s1201
          %s1203 = sand.u32 %s159, 1
          %s1204 = smul.addr %s1203, 16
          %s1205 = scalar_lea.vmem [#allocation5], %s1204
          %1206 = dma.done %s1202, 256
        $region52: #{tpu_custom_call.1} parent=47 // pred_fallthru
          _
      $region48: #{tpu_custom_call.1} parent=5 // pred_fallthru
        _
    $region6: #{tpu_custom_call.1} parent=1 // loop_footer
      %s20 = sadd.s32 1, %s16
    $region7: #{tpu_custom_call.1} parent=1 // loop_footer_branch
      %15 = sbr.rel target = $region3
    $region8: #{tpu_custom_call.1} parent=1 // loop_exit
      _
    %1207 = vsyncpa [#allocation3], 1
    %s1208 = scalar_lea.sflag [#allocation3], 1
    %1209 = vsyncpa %s1208, 1
    %1210 = vsyncpa [#allocation4], 1
    %s1211 = scalar_lea.sflag [#allocation4], 1
    %1212 = vsyncpa %s1211, 1

</llo_original>
